<compile_context>
chip_gen: v7x
topology: tpu7x:2x2x1
jax: 0.10.0
libtpu: 0.0.40
codegen_flags: <defaults>
</compile_context>

<pallas_src>
import math

import jax
import jax.numpy as jnp
from jax.experimental import pallas as pl
from jax.experimental.pallas import tpu as pltpu


D_MODEL = 32      # embedding dim used by model_crossFeat (args.hidden_dim)
MAX_LEN = 4       # PositionalEncoding_query default max_len
LANES = 128       # TPU vreg lane width


# --------------------- "register_buffer" (built once) ---------------------

def make_sinusoidal_pe(max_len: int, d_model: int) -> jnp.ndarray:
    """Exact port of the PyTorch __init__ buffer: pe[max_len, 1, d_model]."""
    position = jnp.arange(max_len, dtype=jnp.float32)[:, None]
    div_term = jnp.exp(jnp.arange(0, d_model, 2, dtype=jnp.float32)
                       * (-math.log(10000.0) / d_model))
    pe = jnp.zeros((max_len, 1, d_model), jnp.float32)
    pe = pe.at[:, 0, 0::2].set(jnp.sin(position * div_term))
    pe = pe.at[:, 0, 1::2].set(jnp.cos(position * div_term))
    return pe


def init_positional_encoding_query(d_model: int, batch: int, max_len: int = MAX_LEN):
    """Module-init equivalent.

    Returns (pe, pe_b):
      pe   : [max_len, 1, d_model]     -- the exact PyTorch buffer
      pe_b : [max_len, batch, d_model] -- pre-broadcast over the fixed batch so
             every forward call can present a lane-dense slab to the kernel
             without any per-call broadcast materialization.
    """
    pe = make_sinusoidal_pe(max_len, d_model)
    pe_b = jnp.broadcast_to(pe, (max_len, batch, d_model))
    return pe, pe_b


# ------------------------------ Pallas kernel ------------------------------

def _add_pe_kernel(x_ref, pe_ref, o_ref):
    # x_ref / pe_ref / o_ref : same lane-dense [rows, 128] slab (or the 3D
    # fallback shapes, where jnp broadcasting handles pe's batch axis of 1).
    # Upcast in-register (v5e VPU has no bf16 ALU), store in x's dtype.
    x = x_ref[...].astype(jnp.float32)
    pe = pe_ref[...].astype(jnp.float32)
    o_ref[...] = (x + pe).astype(o_ref.dtype)


_VMEM_SPEC = pl.BlockSpec(memory_space=pltpu.MemorySpace.VMEM)


def positional_encoding_query(x: jnp.ndarray, pe_b: jnp.ndarray) -> jnp.ndarray:
    """y = x + pe  (eval-mode dropout == identity).

    x    : [seq_len, batch, d_model]
    pe_b : [max_len, batch, d_model]  (pre-broadcast buffer from init)
    """
    S, B, D = x.shape
    dtype = x.dtype
    pe_b = pe_b[:S].astype(dtype)          # static slice + (no-op for f32) cast
    # TODO(synk): training-mode nn.Dropout(p=0.1) not implemented (inference
    # semantics); if needed, use pltpu.prng_seed + pltpu.prng_random_bits in-kernel.

    n = S * B * D
    if n % LANES == 0:
        # Lane-dense path: one full-width [rows, 128] slab, unmasked vld/vst.
        rows = n // LANES
        x2 = x.reshape(rows, LANES)
        p2 = pe_b.reshape(rows, LANES)
        y2 = pl.pallas_call(
            _add_pe_kernel,
            out_shape=jax.ShapeDtypeStruct((rows, LANES), dtype),
            in_specs=[_VMEM_SPEC, _VMEM_SPEC],
            out_specs=_VMEM_SPEC,
            input_output_aliases={0: 0},   # add effectively in-place
        )(x2, p2)
        return y2.reshape(S, B, D)

    # Fallback (odd sizes): whole 3D arrays in VMEM, still no grid.
    return pl.pallas_call(
        _add_pe_kernel,
        out_shape=jax.ShapeDtypeStruct((S, B, D), dtype),
        in_specs=[_VMEM_SPEC, _VMEM_SPEC],
        out_specs=_VMEM_SPEC,
        input_output_aliases={0: 0},
    )(x, pe_b)


# ---------------------------------- main ----------------------------------

if __name__ == "__main__":
    key = jax.random.PRNGKey(0)
    S, B, D = MAX_LEN, 2, D_MODEL

    pe, pe_b = init_positional_encoding_query(D, B, MAX_LEN)   # built once
    x = jax.random.normal(key, (S, B, D), jnp.float32)          # [seq, batch, d_model]

    fwd = jax.jit(positional_encoding_query)
    y = jax.block_until_ready(fwd(x, pe_b))

    # pure-JAX reference (eval-mode dropout is identity)
    y_ref = x + pe[:S]
    assert y.shape == (S, B, D), y.shape
    assert bool(jnp.all(jnp.isfinite(y)))
    assert bool(jnp.allclose(y, y_ref, atol=1e-6, rtol=1e-6))
    print("KERNEL_OK")
</pallas_src>

<mosaic_0001>
module attributes {stable_mosaic.version = 11 : i64} {
  func.func @_add_pe_kernel(%arg0: memref<2x128xf32, #tpu.memory_space<vmem>>, %arg1: memref<2x128xf32, #tpu.memory_space<vmem>>, %arg2: memref<2x128xf32, #tpu.memory_space<vmem>>) attributes {dimension_semantics = [], scalar_prefetch = 0 : i64, scratch_operands = 0 : i64, tpu.core_type = #tpu.core_type<tc>} {
    %c0 = arith.constant 0 : index
    %c0_0 = arith.constant 0 : index
    %0 = vector.load %arg0[%c0, %c0_0] : memref<2x128xf32, #tpu.memory_space<vmem>>, vector<2x128xf32>
    %c0_1 = arith.constant 0 : index
    %c0_2 = arith.constant 0 : index
    %1 = vector.load %arg1[%c0_1, %c0_2] : memref<2x128xf32, #tpu.memory_space<vmem>>, vector<2x128xf32>
    %2 = arith.addf %0, %1 : vector<2x128xf32>
    %c0_3 = arith.constant 0 : index
    %c0_4 = arith.constant 0 : index
    %3 = vector.load %arg2[%c0_3, %c0_4] : memref<2x128xf32, #tpu.memory_space<vmem>>, vector<2x128xf32>
    tpu.vector_store %arg2[%c0_3, %c0_4], %2 {strides = array<i32>} : memref<2x128xf32, #tpu.memory_space<vmem>>, vector<2x128xf32>,
    return
  }
}

</mosaic_0001>

<llo_original>
// kernel: positional_encoding_query.1
$region0: #{positional_encoding_query.1}
  #allocation0 [shape = 'u32[]', space=smem, size = 0x4, offset = 0x4, fixed_abs, tag = 'smem constant byte address 0x4 - core index']
  #allocation1 [shape = 'u32[144,128]{1,0:T(1,128)}', space=vmem, size = 0x12000, scoped, tag = 'internal scratch']
  %s0 = inlined_call_operand.vmem [shape: f32[2,128], index: 0, kind: input, shape index: {}, may-alias: {0,2}]
  %s1 = inlined_call_operand.vmem [shape: f32[2,128], index: 1, kind: input, shape index: {}]
  %s2 = inlined_call_operand.vmem [shape: f32[2,128], index: 2, kind: output, shape index: {}, may-alias: {0,2}]
  %s3 = sld [smem:[#allocation0]]
  $region18: #{positional_encoding_query.1} parent=0
    _
  %s5 = ssub.s32 1, %s3
  %s6 = scalar_select 0, %s5, %s3
  // Predicated region
  $region2: #{positional_encoding_query.1} parent=0 // pred_check
    _
  $region3: #{positional_encoding_query.1} parent=0 // pred_check_branch
    %8 = sbr.rel (0) target = $region5
  $region4: #{positional_encoding_query.1} parent=0 // pred_region
    _
  $region5: #{positional_encoding_query.1} parent=0 // pred_fallthru
    _
  // Predicated region
  $region6: #{positional_encoding_query.1} parent=0 // pred_check
    _
  $region7: #{positional_encoding_query.1} parent=0 // pred_check_branch
    %10 = sbr.rel (0) target = $region9
  $region8: #{positional_encoding_query.1} parent=0 // pred_region
    _
  $region9: #{positional_encoding_query.1} parent=0 // pred_fallthru
    _
  %v11 = vld [vmem:[%s0] sm:$0x3]
  %v12 = vld [vmem:[%s1] sm:$0x3]
  %v13 = vadd.f32 %v11, %v12
  %14 = vst [vmem:[%s2] sm:$0x3] %v13
  // Predicated region
  $region10: #{positional_encoding_query.1} parent=0 // pred_check
    _
  $region11: #{positional_encoding_query.1} parent=0 // pred_check_branch
    %16 = sbr.rel (0) target = $region13
  $region12: #{positional_encoding_query.1} parent=0 // pred_region
    _
  $region13: #{positional_encoding_query.1} parent=0 // pred_fallthru
    _
  // Predicated region
  $region14: #{positional_encoding_query.1} parent=0 // pred_check
    _
  $region15: #{positional_encoding_query.1} parent=0 // pred_check_branch
    %18 = sbr.rel (0) target = $region17
  $region16: #{positional_encoding_query.1} parent=0 // pred_region
    _
  $region17: #{positional_encoding_query.1} parent=0 // pred_fallthru
    _

</llo_original>
